<compile_context>
chip_gen: v7x
topology: tpu7x:2x2x1
jax: 0.10.0
libtpu: 0.0.40
codegen_flags: <defaults>
</compile_context>

<pallas_src>
import jax
import jax.numpy as jnp
from jax.experimental import pallas as pl
from jax.experimental.pallas import tpu as pltpu


# ----------------------------------------------------------------------------
# Parameter construction (mirrors __init__ + updateParameters, deterministic)
# ----------------------------------------------------------------------------
def make_params(key, nx, ny, nu, nq, epsilon=0.01, alpha=0.0,
                bias=True, linear_output=False, std=1.0):
    ks = jax.random.split(key, 12)
    f32 = jnp.float32

    Pstar = jax.random.normal(ks[0], (nx, nx), f32) * std
    Chi   = jax.random.normal(ks[1], (nx, nq), f32) * std
    Y1    = jax.random.normal(ks[2], (nx, nx), f32) * std
    B2    = jax.random.normal(ks[3], (nx, nu), f32) * std
    D12   = jax.random.normal(ks[4], (nq, nu), f32) * std
    C2    = jax.random.normal(ks[5], (ny, nx), f32) * std
    D21   = (jnp.zeros((ny, nq), f32) if linear_output
             else jax.random.normal(ks[6], (ny, nq), f32) * std)
    D22   = jax.random.normal(ks[7], (ny, nu), f32) * std
    if bias:
        bx = jax.random.normal(ks[8],  (nx, 1), f32) * std
        bv = jax.random.normal(ks[9],  (nq, 1), f32) * std
        by = jax.random.normal(ks[10], (ny, 1), f32) * std
    else:
        bx = jnp.zeros((nx, 1), f32)
        bv = jnp.zeros((nq, 1), f32)
        by = jnp.zeros((ny, 1), f32)
    X = jax.random.normal(ks[11], (nx + nq, nx + nq), f32) * std

    # --- updateParameters() ---------------------------------------------
    # F.linear(A, B) = A @ B.T
    P = 0.5 * Pstar @ Pstar.T + epsilon * jnp.eye(nx, dtype=f32)
    H = X @ X.T + epsilon * jnp.eye(nx + nq, dtype=f32)
    H1 = H[:nx, :nx]
    H2 = H[:nx, nx:]
    H4 = H[nx:, nx:]
    Y = -0.5 * (H1 + alpha * P + Y1 - Y1.T)
    Lambda = 0.5 * jnp.diag(jnp.diagonal(H4))

    P_inv = jnp.linalg.inv(P)
    L_inv = jnp.linalg.inv(Lambda)

    A   = P_inv @ Y                      # F.linear(inv(P), Y.T)
    D11 = -(L_inv @ jnp.tril(H4, -1))    # -F.linear(inv(L), tril(H4,-1).T)
    C1  = L_inv @ Chi.T                  # F.linear(inv(L), Chi)
    Z   = -H2 - Chi
    B1  = P_inv @ Z                      # F.linear(inv(P), Z.T)

    return dict(A=A, B1=B1, B2=B2, C1=C1, D11=D11, D12=D12,
                C2=C2, D21=D21, D22=D22,
                bx=bx, bv=bv, by=by)


# ----------------------------------------------------------------------------
# One-time (parameter-update-time) weight packing for the fused forward kernel
# ----------------------------------------------------------------------------
def pack_forward_weights(p):
    """Pack the REN forward weights into the fused layout used by the kernel.

    Called once per parameter update (amortized over every forward call), NOT
    inside the per-call jitted path.
    """
    f32 = jnp.float32
    A, B1, B2 = p["A"], p["B1"], p["B2"]
    C1, D11, D12 = p["C1"], p["D11"], p["D12"]
    bx, bv = p["bx"], p["bv"]
    nx = A.shape[0]
    nu = B2.shape[1]
    nq = C1.shape[0]

    # Single fused input->state weight: sw = [xi|u] @ W_all + bias
    #   columns [0:nx]      -> output accumulator base (A.T / B2.T / bx)
    #   columns [nx:nx+nq]  -> pre-activation base      (C1.T / D12.T / bv)
    w_all = jnp.concatenate(
        [jnp.concatenate([A.T, C1.T], axis=1),          # (nx, nx+nq)
         jnp.concatenate([B2.T, D12.T], axis=1)],       # (nu, nx+nq)
        axis=0).astype(f32)                              # (nx+nu, nx+nq)
    bias = jnp.concatenate(
        [bx.reshape(1, nx), bv.reshape(1, nq)], axis=1).astype(f32)  # (1, nx+nq)

    # Per-step rank-1 update rows: [B1.T | D11.T].
    # D11 is strictly lower-triangular by construction; zero the diagonal
    # explicitly so column i is never fed back into its own tanh even if the
    # re-parameterization changes (correctness guard from the review).
    D11_sl = D11 - jnp.diag(jnp.diagonal(D11))
    e_rows = jnp.concatenate([B1.T, D11_sl.T], axis=1).astype(f32)   # (nq, nx+nq)

    return dict(w_all=w_all, bias=bias, e_rows=e_rows, nx=nx, nu=nu, nq=nq)


# ----------------------------------------------------------------------------
# Pallas kernel: forward(t, xi, u)  — one MXU dot + unrolled rank-1 updates
# ----------------------------------------------------------------------------
def _ren_forward_kernel(xu_ref, w_all_ref, bias_ref, e_ref, out_ref):
    # Single fused MXU dot:
    #   sw[:, :nx] = xi @ A.T + u @ B2.T + bx     (output accumulator)
    #   sw[:, nx:] = xi @ C1.T + u @ D12.T + bv   (pre-activation base)
    sw = (jnp.dot(xu_ref[...], w_all_ref[...],
                  preferred_element_type=jnp.float32)
          + bias_ref[...])                                        # (B, nx+nq)

    # Hoist loop-invariant loads: e_rows stays resident in registers (~2 vregs).
    e = e_ref[...]                                                # (nq, nx+nq)
    nq = e.shape[0]
    nx = sw.shape[1] - nq

    # Fully-unrolled forward substitution as rank-1 row updates.
    # Step i: extract v_i (lane slice) -> tanh (EUP) -> broadcast-mul-add (VPU).
    # The single FMA both injects D11 feedback into later v-columns and
    # accumulates t_i * B1[:, i] into the output columns, so there is no
    # trailing MXU dot after the serial chain.
    for i in range(nq):                      # nq is static -> unrolled at trace
        t_i = jnp.tanh(sw[:, nx + i:nx + i + 1])                  # (B, 1)
        sw = sw + t_i * e[i:i + 1, :]                             # rank-1 update

    out_ref[...] = sw[:, :nx]                                     # (B, nx)


@jax.jit
def ren_forward(xi, u, w_all, bias, e_rows):
    """xi_dot = forward(t, xi, u) using pre-packed weights (see pack_forward_weights)."""
    B = xi.shape[0]
    nq = e_rows.shape[0]
    nx = w_all.shape[1] - nq

    # Only per-call DATA packing remains in the jitted path (weights are pre-packed).
    xu = jnp.concatenate([xi, u], axis=1)                         # (B, nx+nu)

    vmem = pl.BlockSpec(memory_space=pltpu.MemorySpace.VMEM)
    return pl.pallas_call(
        _ren_forward_kernel,
        out_shape=jax.ShapeDtypeStruct((B, nx), jnp.float32),
        in_specs=[vmem] * 4,
        out_specs=vmem,
    )(xu, w_all, bias, e_rows)


# ----------------------------------------------------------------------------
# Pure-JAX reference (direct transcription of the PyTorch forward loop)
# ----------------------------------------------------------------------------
def ren_forward_ref(xi, u, p):
    n = xi.shape[0]
    nq = p["C1"].shape[0]
    w = jnp.zeros((n, nq), jnp.float32)
    for i in range(nq):
        v = (xi @ p["C1"][i, :]
             + w @ p["D11"][i, :]
             + p["bv"][i, 0]
             + u @ p["D12"][i, :])[:, None]
        vec = jnp.zeros((nq, 1), jnp.float32).at[i, 0].set(1.0)
        w = w + jnp.tanh(v) @ vec.T
    xi_ = (xi @ p["A"].T + w @ p["B1"].T
           + jnp.ones((n, 1), jnp.float32) @ p["bx"].T
           + u @ p["B2"].T)
    return xi_


# ----------------------------------------------------------------------------
if __name__ == "__main__":
    nx, ny, nu, nq = 32, 4, 8, 16
    batch = 8

    key = jax.random.PRNGKey(0)
    pkey, xkey, ukey = jax.random.split(key, 3)
    params = make_params(pkey, nx, ny, nu, nq, epsilon=0.01, alpha=0.0,
                         bias=True, linear_output=False)

    # One-time packing (parameter-update time), amortized over all forward calls.
    packed = pack_forward_weights(params)

    xi = jax.random.normal(xkey, (batch, nx), jnp.float32)
    u = jax.random.normal(ukey, (batch, nu), jnp.float32)

    out = ren_forward(xi, u, packed["w_all"], packed["bias"], packed["e_rows"])
    out = jax.block_until_ready(out)

    ref = ren_forward_ref(xi, u, params)
    assert out.shape == (batch, nx)
    assert jnp.allclose(out, ref, atol=1e-3, rtol=1e-3), (
        f"max abs err = {jnp.max(jnp.abs(out - ref))}")

    print("KERNEL_OK")
</pallas_src>

<mosaic_0001>
module attributes {stable_mosaic.version = 11 : i64} {
  func.func @_ren_forward_kernel(%arg0: memref<8x40xf32, #tpu.memory_space<vmem>>, %arg1: memref<40x48xf32, #tpu.memory_space<vmem>>, %arg2: memref<1x48xf32, #tpu.memory_space<vmem>>, %arg3: memref<16x48xf32, #tpu.memory_space<vmem>>, %arg4: memref<8x32xf32, #tpu.memory_space<vmem>>) attributes {dimension_semantics = [], scalar_prefetch = 0 : i64, scratch_operands = 0 : i64, tpu.core_type = #tpu.core_type<tc>} {
    %c0 = arith.constant 0 : index
    %c0_0 = arith.constant 0 : index
    %0 = vector.load %arg0[%c0, %c0_0] : memref<8x40xf32, #tpu.memory_space<vmem>>, vector<8x40xf32>
    %c0_1 = arith.constant 0 : index
    %c0_2 = arith.constant 0 : index
    %1 = vector.load %arg1[%c0_1, %c0_2] : memref<40x48xf32, #tpu.memory_space<vmem>>, vector<40x48xf32>
    %cst = arith.constant dense<0.000000e+00> : vector<8x48xf32>
    %2 = tpu.matmul %0, %1, %cst {dimension_numbers = #tpu.dot_dimension_numbers<[1], [0], [0], [1], [0, 0, 1, 1], [], []>} : vector<8x40xf32>, vector<40x48xf32>, vector<8x48xf32> -> vector<8x48xf32>
    %c0_3 = arith.constant 0 : index
    %c0_4 = arith.constant 0 : index
    %3 = vector.load %arg2[%c0_3, %c0_4] : memref<1x48xf32, #tpu.memory_space<vmem>>, vector<1x48xf32>
    %4 = vector.broadcast %3 : vector<1x48xf32> to vector<8x48xf32>
    %5 = arith.addf %2, %4 : vector<8x48xf32>
    %c0_5 = arith.constant 0 : index
    %c0_6 = arith.constant 0 : index
    %6 = vector.load %arg3[%c0_5, %c0_6] : memref<16x48xf32, #tpu.memory_space<vmem>>, vector<16x48xf32>
    %7 = vector.extract_strided_slice %5 {offsets = [0, 32], sizes = [8, 1], strides = [1, 1]} : vector<8x48xf32> to vector<8x1xf32>
    %8 = math.tanh %7 : vector<8x1xf32>
    %9 = vector.extract_strided_slice %6 {offsets = [0, 0], sizes = [1, 48], strides = [1, 1]} : vector<16x48xf32> to vector<1x48xf32>
    %10 = vector.broadcast %8 : vector<8x1xf32> to vector<8x48xf32>
    %11 = vector.broadcast %9 : vector<1x48xf32> to vector<8x48xf32>
    %12 = arith.mulf %10, %11 : vector<8x48xf32>
    %13 = arith.addf %5, %12 : vector<8x48xf32>
    %14 = vector.extract_strided_slice %13 {offsets = [0, 33], sizes = [8, 1], strides = [1, 1]} : vector<8x48xf32> to vector<8x1xf32>
    %15 = math.tanh %14 : vector<8x1xf32>
    %16 = vector.extract_strided_slice %6 {offsets = [1, 0], sizes = [1, 48], strides = [1, 1]} : vector<16x48xf32> to vector<1x48xf32>
    %17 = vector.broadcast %15 : vector<8x1xf32> to vector<8x48xf32>
    %18 = vector.broadcast %16 : vector<1x48xf32> to vector<8x48xf32>
    %19 = arith.mulf %17, %18 : vector<8x48xf32>
    %20 = arith.addf %13, %19 : vector<8x48xf32>
    %21 = vector.extract_strided_slice %20 {offsets = [0, 34], sizes = [8, 1], strides = [1, 1]} : vector<8x48xf32> to vector<8x1xf32>
    %22 = math.tanh %21 : vector<8x1xf32>
    %23 = vector.extract_strided_slice %6 {offsets = [2, 0], sizes = [1, 48], strides = [1, 1]} : vector<16x48xf32> to vector<1x48xf32>
    %24 = vector.broadcast %22 : vector<8x1xf32> to vector<8x48xf32>
    %25 = vector.broadcast %23 : vector<1x48xf32> to vector<8x48xf32>
    %26 = arith.mulf %24, %25 : vector<8x48xf32>
    %27 = arith.addf %20, %26 : vector<8x48xf32>
    %28 = vector.extract_strided_slice %27 {offsets = [0, 35], sizes = [8, 1], strides = [1, 1]} : vector<8x48xf32> to vector<8x1xf32>
    %29 = math.tanh %28 : vector<8x1xf32>
    %30 = vector.extract_strided_slice %6 {offsets = [3, 0], sizes = [1, 48], strides = [1, 1]} : vector<16x48xf32> to vector<1x48xf32>
    %31 = vector.broadcast %29 : vector<8x1xf32> to vector<8x48xf32>
    %32 = vector.broadcast %30 : vector<1x48xf32> to vector<8x48xf32>
    %33 = arith.mulf %31, %32 : vector<8x48xf32>
    %34 = arith.addf %27, %33 : vector<8x48xf32>
    %35 = vector.extract_strided_slice %34 {offsets = [0, 36], sizes = [8, 1], strides = [1, 1]} : vector<8x48xf32> to vector<8x1xf32>
    %36 = math.tanh %35 : vector<8x1xf32>
    %37 = vector.extract_strided_slice %6 {offsets = [4, 0], sizes = [1, 48], strides = [1, 1]} : vector<16x48xf32> to vector<1x48xf32>
    %38 = vector.broadcast %36 : vector<8x1xf32> to vector<8x48xf32>
    %39 = vector.broadcast %37 : vector<1x48xf32> to vector<8x48xf32>
    %40 = arith.mulf %38, %39 : vector<8x48xf32>
    %41 = arith.addf %34, %40 : vector<8x48xf32>
    %42 = vector.extract_strided_slice %41 {offsets = [0, 37], sizes = [8, 1], strides = [1, 1]} : vector<8x48xf32> to vector<8x1xf32>
    %43 = math.tanh %42 : vector<8x1xf32>
    %44 = vector.extract_strided_slice %6 {offsets = [5, 0], sizes = [1, 48], strides = [1, 1]} : vector<16x48xf32> to vector<1x48xf32>
    %45 = vector.broadcast %43 : vector<8x1xf32> to vector<8x48xf32>
    %46 = vector.broadcast %44 : vector<1x48xf32> to vector<8x48xf32>
    %47 = arith.mulf %45, %46 : vector<8x48xf32>
    %48 = arith.addf %41, %47 : vector<8x48xf32>
    %49 = vector.extract_strided_slice %48 {offsets = [0, 38], sizes = [8, 1], strides = [1, 1]} : vector<8x48xf32> to vector<8x1xf32>
    %50 = math.tanh %49 : vector<8x1xf32>
    %51 = vector.extract_strided_slice %6 {offsets = [6, 0], sizes = [1, 48], strides = [1, 1]} : vector<16x48xf32> to vector<1x48xf32>
    %52 = vector.broadcast %50 : vector<8x1xf32> to vector<8x48xf32>
    %53 = vector.broadcast %51 : vector<1x48xf32> to vector<8x48xf32>
    %54 = arith.mulf %52, %53 : vector<8x48xf32>
    %55 = arith.addf %48, %54 : vector<8x48xf32>
    %56 = vector.extract_strided_slice %55 {offsets = [0, 39], sizes = [8, 1], strides = [1, 1]} : vector<8x48xf32> to vector<8x1xf32>
    %57 = math.tanh %56 : vector<8x1xf32>
    %58 = vector.extract_strided_slice %6 {offsets = [7, 0], sizes = [1, 48], strides = [1, 1]} : vector<16x48xf32> to vector<1x48xf32>
    %59 = vector.broadcast %57 : vector<8x1xf32> to vector<8x48xf32>
    %60 = vector.broadcast %58 : vector<1x48xf32> to vector<8x48xf32>
    %61 = arith.mulf %59, %60 : vector<8x48xf32>
    %62 = arith.addf %55, %61 : vector<8x48xf32>
    %63 = vector.extract_strided_slice %62 {offsets = [0, 40], sizes = [8, 1], strides = [1, 1]} : vector<8x48xf32> to vector<8x1xf32>
    %64 = math.tanh %63 : vector<8x1xf32>
    %65 = vector.extract_strided_slice %6 {offsets = [8, 0], sizes = [1, 48], strides = [1, 1]} : vector<16x48xf32> to vector<1x48xf32>
    %66 = vector.broadcast %64 : vector<8x1xf32> to vector<8x48xf32>
    %67 = vector.broadcast %65 : vector<1x48xf32> to vector<8x48xf32>
    %68 = arith.mulf %66, %67 : vector<8x48xf32>
    %69 = arith.addf %62, %68 : vector<8x48xf32>
    %70 = vector.extract_strided_slice %69 {offsets = [0, 41], sizes = [8, 1], strides = [1, 1]} : vector<8x48xf32> to vector<8x1xf32>
    %71 = math.tanh %70 : vector<8x1xf32>
    %72 = vector.extract_strided_slice %6 {offsets = [9, 0], sizes = [1, 48], strides = [1, 1]} : vector<16x48xf32> to vector<1x48xf32>
    %73 = vector.broadcast %71 : vector<8x1xf32> to vector<8x48xf32>
    %74 = vector.broadcast %72 : vector<1x48xf32> to vector<8x48xf32>
    %75 = arith.mulf %73, %74 : vector<8x48xf32>
    %76 = arith.addf %69, %75 : vector<8x48xf32>
    %77 = vector.extract_strided_slice %76 {offsets = [0, 42], sizes = [8, 1], strides = [1, 1]} : vector<8x48xf32> to vector<8x1xf32>
    %78 = math.tanh %77 : vector<8x1xf32>
    %79 = vector.extract_strided_slice %6 {offsets = [10, 0], sizes = [1, 48], strides = [1, 1]} : vector<16x48xf32> to vector<1x48xf32>
    %80 = vector.broadcast %78 : vector<8x1xf32> to vector<8x48xf32>
    %81 = vector.broadcast %79 : vector<1x48xf32> to vector<8x48xf32>
    %82 = arith.mulf %80, %81 : vector<8x48xf32>
    %83 = arith.addf %76, %82 : vector<8x48xf32>
    %84 = vector.extract_strided_slice %83 {offsets = [0, 43], sizes = [8, 1], strides = [1, 1]} : vector<8x48xf32> to vector<8x1xf32>
    %85 = math.tanh %84 : vector<8x1xf32>
    %86 = vector.extract_strided_slice %6 {offsets = [11, 0], sizes = [1, 48], strides = [1, 1]} : vector<16x48xf32> to vector<1x48xf32>
    %87 = vector.broadcast %85 : vector<8x1xf32> to vector<8x48xf32>
    %88 = vector.broadcast %86 : vector<1x48xf32> to vector<8x48xf32>
    %89 = arith.mulf %87, %88 : vector<8x48xf32>
    %90 = arith.addf %83, %89 : vector<8x48xf32>
    %91 = vector.extract_strided_slice %90 {offsets = [0, 44], sizes = [8, 1], strides = [1, 1]} : vector<8x48xf32> to vector<8x1xf32>
    %92 = math.tanh %91 : vector<8x1xf32>
    %93 = vector.extract_strided_slice %6 {offsets = [12, 0], sizes = [1, 48], strides = [1, 1]} : vector<16x48xf32> to vector<1x48xf32>
    %94 = vector.broadcast %92 : vector<8x1xf32> to vector<8x48xf32>
    %95 = vector.broadcast %93 : vector<1x48xf32> to vector<8x48xf32>
    %96 = arith.mulf %94, %95 : vector<8x48xf32>
    %97 = arith.addf %90, %96 : vector<8x48xf32>
    %98 = vector.extract_strided_slice %97 {offsets = [0, 45], sizes = [8, 1], strides = [1, 1]} : vector<8x48xf32> to vector<8x1xf32>
    %99 = math.tanh %98 : vector<8x1xf32>
    %100 = vector.extract_strided_slice %6 {offsets = [13, 0], sizes = [1, 48], strides = [1, 1]} : vector<16x48xf32> to vector<1x48xf32>
    %101 = vector.broadcast %99 : vector<8x1xf32> to vector<8x48xf32>
    %102 = vector.broadcast %100 : vector<1x48xf32> to vector<8x48xf32>
    %103 = arith.mulf %101, %102 : vector<8x48xf32>
    %104 = arith.addf %97, %103 : vector<8x48xf32>
    %105 = vector.extract_strided_slice %104 {offsets = [0, 46], sizes = [8, 1], strides = [1, 1]} : vector<8x48xf32> to vector<8x1xf32>
    %106 = math.tanh %105 : vector<8x1xf32>
    %107 = vector.extract_strided_slice %6 {offsets = [14, 0], sizes = [1, 48], strides = [1, 1]} : vector<16x48xf32> to vector<1x48xf32>
    %108 = vector.broadcast %106 : vector<8x1xf32> to vector<8x48xf32>
    %109 = vector.broadcast %107 : vector<1x48xf32> to vector<8x48xf32>
    %110 = arith.mulf %108, %109 : vector<8x48xf32>
    %111 = arith.addf %104, %110 : vector<8x48xf32>
    %112 = vector.extract_strided_slice %111 {offsets = [0, 47], sizes = [8, 1], strides = [1, 1]} : vector<8x48xf32> to vector<8x1xf32>
    %113 = math.tanh %112 : vector<8x1xf32>
    %114 = vector.extract_strided_slice %6 {offsets = [15, 0], sizes = [1, 48], strides = [1, 1]} : vector<16x48xf32> to vector<1x48xf32>
    %115 = vector.broadcast %113 : vector<8x1xf32> to vector<8x48xf32>
    %116 = vector.broadcast %114 : vector<1x48xf32> to vector<8x48xf32>
    %117 = arith.mulf %115, %116 : vector<8x48xf32>
    %118 = arith.addf %111, %117 : vector<8x48xf32>
    %119 = vector.extract_strided_slice %118 {offsets = [0, 0], sizes = [8, 32], strides = [1, 1]} : vector<8x48xf32> to vector<8x32xf32>
    %c0_7 = arith.constant 0 : index
    %c0_8 = arith.constant 0 : index
    %120 = vector.load %arg4[%c0_7, %c0_8] : memref<8x32xf32, #tpu.memory_space<vmem>>, vector<8x32xf32>
    tpu.vector_store %arg4[%c0_7, %c0_8], %119 {strides = array<i32>} : memref<8x32xf32, #tpu.memory_space<vmem>>, vector<8x32xf32>,
    return
  }
}

</mosaic_0001>

<llo_original>
// kernel: ren_forward.1
$region0: #{ren_forward.1}
  #allocation0 [shape = 'u32[]', space=smem, size = 0x4, offset = 0x4, fixed_abs, tag = 'smem constant byte address 0x4 - core index']
  #allocation1 [shape = 'u32[144,128]{1,0:T(1,128)}', space=vmem, size = 0x12000, scoped, tag = 'internal scratch']
  %s0 = inlined_call_operand.vmem [shape: f32[8,40], index: 0, kind: input, shape index: {}]
  %s1 = inlined_call_operand.hbm [shape: f32[40,48], index: 1, kind: input, shape index: {}]
  %s2 = inlined_call_operand.vmem [shape: f32[1,48], index: 2, kind: input, shape index: {}]
  %s3 = inlined_call_operand.vmem [shape: f32[16,48], index: 3, kind: input, shape index: {}]
  %s4 = inlined_call_operand.hbm [shape: f32[8,32], index: 4, kind: output, shape index: {}]
  %s5 = sld [smem:[#allocation0]]
  $region30: #{ren_forward.1} parent=0
    _
  %s7 = ssub.s32 1, %s5
  %s8 = scalar_select 0, %s7, %s5
  $region1: #{ren_forward.1} parent=0
    #allocation2 [shape = 'u8[20480]{0}', space=vmem, size = 0x5000, scoped, tag = 'input window, operand 1, single buffered']
    #allocation3 [shape = 's32[1]{0}', space=sflag, size = 0x4, scoped, tag = 'scoped memory for ren_forward.1']
    #allocation4 [shape = 's32[1]{0}', space=sflag, size = 0x4, scoped, tag = 'scoped memory for ren_forward.1']
    #allocation5 [shape = 'u8[4096]{0}', space=vmem, size = 0x1000, scoped, tag = 'output window, operand 0, single buffered']
    %9 = vsyncpa [#allocation3], 0
    %10 = vsyncpa [#allocation4], 0
    // Predicated region
    $region2: #{ren_forward.1} parent=1 // pred_check
      _
    $region3: #{ren_forward.1} parent=1 // pred_check_branch
      %12 = sbr.rel (0) target = $region5
    $region4: #{ren_forward.1} parent=1 // pred_region
      _
    $region5: #{ren_forward.1} parent=1 // pred_fallthru
      _
    // Predicated region
    $region6: #{ren_forward.1} parent=1 // pred_check
      _
    $region7: #{ren_forward.1} parent=1 // pred_check_branch
      %14 = sbr.rel (0) target = $region9
    $region8: #{ren_forward.1} parent=1 // pred_region
      %s16 = ssub.s32 640, 640
      %17 = vsyncadd [#allocation3], %s16
      %s18 = sshll.u32 [#allocation2], 4
      %s19 = int_to_ptr.vmem [resolvable:$true] %s18
      %24 = dma.hbm_to_vmem [thread:$0]  %s1, 640, %s19, [#allocation3], 128, 128, 8
    $region9: #{ren_forward.1} parent=1 // pred_fallthru
      _
    // Predicated region
    $region10: #{ren_forward.1} parent=1 // pred_check
      _
    $region11: #{ren_forward.1} parent=1 // pred_check_branch
      %26 = sbr.rel (0) target = $region13
    $region12: #{ren_forward.1} parent=1 // pred_region
      _
    $region13: #{ren_forward.1} parent=1 // pred_fallthru
      _
    // Predicated region
    $region14: #{ren_forward.1} parent=1 // pred_check
      _
    $region15: #{ren_forward.1} parent=1 // pred_check_branch
      %28 = sbr.rel (0) target = $region17
    $region16: #{ren_forward.1} parent=1 // pred_region
      _
    $region17: #{ren_forward.1} parent=1 // pred_fallthru
      _
    // Predicated region
    $region18: #{ren_forward.1} parent=1 // pred_check
      _
    $region19: #{ren_forward.1} parent=1 // pred_check_branch
      %30 = sbr.rel (0) target = $region21
    $region20: #{ren_forward.1} parent=1 // pred_region
      %31 = dma.done [#allocation3], 640
    $region21: #{ren_forward.1} parent=1 // pred_fallthru
      _
    %v32 = vld [vmem:[%s0] sm:$0xff]
    %v33 = vld [vmem:[#allocation2] sm:$0xff]
    %v34 = vld [vmem:[#allocation2 + $0x8] sm:$0xff]
    %v35 = vld [vmem:[#allocation2 + $0x10] sm:$0xff]
    %v36 = vld [vmem:[#allocation2 + $0x18] sm:$0xff]
    %v37 = vld [vmem:[#allocation2 + $0x20] sm:$0xff]
    %v38 = vld [vmem:[%s2] sm:$0x1]
    %v40 = vlaneseq
    %v41 = vshrl.u32 %v40, 7
    %v42 = vsub.s32 0, %v41
    %v43 = vrot.slane %v38, %v42
    %vm45 = vcmask 326656
    %v47 = vsel %vm45, %v32, 0
    %49 = vmatprep.subr.mxu0 0.0
    %50 = vmatpush1.msra.mxu0 %v33
    %51 = vmatprep.subr.mxu0 0.0
    %52 = vmatpush1.msra.mxu0 %v34
    %53 = vmatprep.subr.mxu0 0.0
    %54 = vmatpush1.msra.mxu0 %v35
    %55 = vmatprep.subr.mxu0 0.0
    %56 = vmatpush1.msra.mxu0 %v36
    %57 = vmatprep.subr.mxu0 0.0
    %58 = vmatpush1.msra.mxu0 %v37
    %59 = vmatprep.subr.mxu0 0.0
    %60 = vmatpush1.msra.mxu0 0.0
    %61 = vmatprep.subr.mxu0 0.0
    %62 = vmatpush1.msra.mxu0 0.0
    %63 = vmatprep.subr.mxu0 0.0
    %64 = vmatpush1.msra.mxu0 0.0
    %65 = vmatprep.subr.mxu0 0.0
    %66 = vmatpush1.msra.mxu0 0.0
    %67 = vmatprep.subr.mxu0 0.0
    %68 = vmatpush1.msra.mxu0 0.0
    %69 = vmatprep.subr.mxu0 0.0
    %70 = vmatpush1.msra.mxu0 0.0
    %71 = vmatprep.subr.mxu0 0.0
    %72 = vmatpush1.msra.mxu0 0.0
    %73 = vmatprep.subr.mxu0 0.0
    %74 = vmatpush1.msra.mxu0 0.0
    %75 = vmatprep.subr.mxu0 0.0
    %76 = vmatpush1.msra.mxu0 0.0
    %77 = vmatprep.subr.mxu0 0.0
    %78 = vmatpush1.msra.mxu0 0.0
    %79 = vmatprep.subr.mxu0 0.0
    %80 = vmatpush1.msra.mxu0 0.0
    %81 = vmatprep.subr.mxu0 0.0
    %82 = vmatpush1.msra.mxu0 0.0
    %83 = vmatprep.subr.mxu0 0.0
    %84 = vmatpush1.msra.mxu0 0.0
    %85 = vmatprep.subr.mxu0 0.0
    %86 = vmatpush1.msra.mxu0 0.0
    %87 = vmatprep.subr.mxu0 0.0
    %88 = vmatpush1.msra.mxu0 0.0
    %89 = vmatprep.subr.mxu0 0.0
    %90 = vmatpush1.msra.mxu0 0.0
    %91 = vmatprep.subr.mxu0 0.0
    %92 = vmatpush1.msra.mxu0 0.0
    %93 = vmatprep.subr.mxu0 0.0
    %94 = vmatpush1.msra.mxu0 0.0
    %95 = vmatprep.subr.mxu0 0.0
    %96 = vmatpush1.msra.mxu0 0.0
    %97 = vmatprep.subr.mxu0 0.0
    %98 = vmatpush1.msra.mxu0 0.0
    %99 = vmatprep.subr.mxu0 0.0
    %100 = vmatpush1.msra.mxu0 0.0
    %101 = vmatprep.subr.mxu0 0.0
    %102 = vmatpush1.msra.mxu0 0.0
    %103 = vmatprep.subr.mxu0 0.0
    %104 = vmatpush1.msra.mxu0 0.0
    %105 = vmatprep.subr.mxu0 0.0
    %106 = vmatpush1.msra.mxu0 0.0
    %107 = vmatprep.subr.mxu0 0.0
    %108 = vmatpush1.msra.mxu0 0.0
    %109 = vmatprep.subr.mxu0 0.0
    %110 = vmatpush1.msra.mxu0 0.0
    %111 = vmatprep.subr.mxu0 0.0
    %112 = vmatpush1.msra.mxu0 0.0
    %113 = vmatprep.mubr.f32.mxu0 0.0
    %114 = vmatmul.mubr.f32.gmra.mrb[0].mxu0 %v47
    %v115 = vpop.f32.mrb[0].mxu0
    %v116 = vadd.f32 %v43, %v115
    %v117 = vpop.f32.mrb[0].mxu0
    %118 = vdwg.mxu0
    %v119 = vld [vmem:[%s3] sm:$0xff]
    %v120 = vld [vmem:[%s3 + $0x8] sm:$0xff]
    %v121 = vtanh.pop %v116
    %123 = vset.pattern.permute.xlu0 32
    %124 = vperm.xlu0 %123, %v121
    %v125 = vpop.permute.xlu0 %124
    %v127 = vlaneseq
    %v128 = vshrl.u32 %v127, 7
    %v129 = vsub.s32 0, %v128
    %v130 = vrot.slane %v119, %v129
    %v131 = vmul.f32 %v125, %v130
    %v132 = vadd.f32 %v116, %v131
    %v133 = vtanh.pop %v132
    %135 = vset.pattern.permute.xlu0 33
    %136 = vperm.xlu0 %135, %v133
    %v137 = vpop.permute.xlu0 %136
    %v139 = vlaneseq
    %v140 = vshrl.u32 %v139, 7
    %v141 = vsub.s32 1, %v140
    %v142 = vrot.slane %v119, %v141
    %v143 = vmul.f32 %v137, %v142
    %v144 = vadd.f32 %v132, %v143
    %v145 = vtanh.pop %v144
    %147 = vset.pattern.permute.xlu0 34
    %148 = vperm.xlu0 %147, %v145
    %v149 = vpop.permute.xlu0 %148
    %v151 = vlaneseq
    %v152 = vshrl.u32 %v151, 7
    %v153 = vsub.s32 2, %v152
    %v154 = vrot.slane %v119, %v153
    %v155 = vmul.f32 %v149, %v154
    %v156 = vadd.f32 %v144, %v155
    %v157 = vtanh.pop %v156
    %159 = vset.pattern.permute.xlu0 35
    %160 = vperm.xlu0 %159, %v157
    %v161 = vpop.permute.xlu0 %160
    %v163 = vlaneseq
    %v164 = vshrl.u32 %v163, 7
    %v165 = vsub.s32 3, %v164
    %v166 = vrot.slane %v119, %v165
    %v167 = vmul.f32 %v161, %v166
    %v168 = vadd.f32 %v156, %v167
    %v169 = vtanh.pop %v168
    %171 = vset.pattern.permute.xlu0 36
    %172 = vperm.xlu0 %171, %v169
    %v173 = vpop.permute.xlu0 %172
    %v175 = vlaneseq
    %v176 = vshrl.u32 %v175, 7
    %v177 = vsub.s32 4, %v176
    %v178 = vrot.slane %v119, %v177
    %v179 = vmul.f32 %v173, %v178
    %v180 = vadd.f32 %v168, %v179
    %v181 = vtanh.pop %v180
    %183 = vset.pattern.permute.xlu0 37
    %184 = vperm.xlu0 %183, %v181
    %v185 = vpop.permute.xlu0 %184
    %v187 = vlaneseq
    %v188 = vshrl.u32 %v187, 7
    %v189 = vsub.s32 5, %v188
    %v190 = vrot.slane %v119, %v189
    %v191 = vmul.f32 %v185, %v190
    %v192 = vadd.f32 %v180, %v191
    %v193 = vtanh.pop %v192
    %195 = vset.pattern.permute.xlu0 38
    %196 = vperm.xlu0 %195, %v193
    %v197 = vpop.permute.xlu0 %196
    %v199 = vlaneseq
    %v200 = vshrl.u32 %v199, 7
    %v201 = vsub.s32 6, %v200
    %v202 = vrot.slane %v119, %v201
    %v203 = vmul.f32 %v197, %v202
    %v204 = vadd.f32 %v192, %v203
    %v205 = vtanh.pop %v204
    %207 = vset.pattern.permute.xlu0 39
    %208 = vperm.xlu0 %207, %v205
    %v209 = vpop.permute.xlu0 %208
    %v211 = vlaneseq
    %v212 = vshrl.u32 %v211, 7
    %v213 = vsub.s32 7, %v212
    %v214 = vrot.slane %v119, %v213
    %v215 = vmul.f32 %v209, %v214
    %v216 = vadd.f32 %v204, %v215
    %v217 = vtanh.pop %v216
    %219 = vset.pattern.permute.xlu0 40
    %220 = vperm.xlu0 %219, %v217
    %v221 = vpop.permute.xlu0 %220
    %v223 = vlaneseq
    %v224 = vshrl.u32 %v223, 7
    %v225 = vsub.s32 0, %v224
    %v226 = vrot.slane %v120, %v225
    %v227 = vmul.f32 %v221, %v226
    %v228 = vadd.f32 %v216, %v227
    %v229 = vtanh.pop %v228
    %231 = vset.pattern.permute.xlu0 41
    %232 = vperm.xlu0 %231, %v229
    %v233 = vpop.permute.xlu0 %232
    %v235 = vlaneseq
    %v236 = vshrl.u32 %v235, 7
    %v237 = vsub.s32 1, %v236
    %v238 = vrot.slane %v120, %v237
    %v239 = vmul.f32 %v233, %v238
    %v240 = vadd.f32 %v228, %v239
    %v241 = vtanh.pop %v240
    %243 = vset.pattern.permute.xlu0 42
    %244 = vperm.xlu0 %243, %v241
    %v245 = vpop.permute.xlu0 %244
    %v247 = vlaneseq
    %v248 = vshrl.u32 %v247, 7
    %v249 = vsub.s32 2, %v248
    %v250 = vrot.slane %v120, %v249
    %v251 = vmul.f32 %v245, %v250
    %v252 = vadd.f32 %v240, %v251
    %v253 = vtanh.pop %v252
    %255 = vset.pattern.permute.xlu0 43
    %256 = vperm.xlu0 %255, %v253
    %v257 = vpop.permute.xlu0 %256
    %v259 = vlaneseq
    %v260 = vshrl.u32 %v259, 7
    %v261 = vsub.s32 3, %v260
    %v262 = vrot.slane %v120, %v261
    %v263 = vmul.f32 %v257, %v262
    %v264 = vadd.f32 %v252, %v263
    %v265 = vtanh.pop %v264
    %267 = vset.pattern.permute.xlu0 44
    %268 = vperm.xlu0 %267, %v265
    %v269 = vpop.permute.xlu0 %268
    %v271 = vlaneseq
    %v272 = vshrl.u32 %v271, 7
    %v273 = vsub.s32 4, %v272
    %v274 = vrot.slane %v120, %v273
    %v275 = vmul.f32 %v269, %v274
    %v276 = vadd.f32 %v264, %v275
    %v277 = vtanh.pop %v276
    %279 = vset.pattern.permute.xlu0 45
    %280 = vperm.xlu0 %279, %v277
    %v281 = vpop.permute.xlu0 %280
    %v283 = vlaneseq
    %v284 = vshrl.u32 %v283, 7
    %v285 = vsub.s32 5, %v284
    %v286 = vrot.slane %v120, %v285
    %v287 = vmul.f32 %v281, %v286
    %v288 = vadd.f32 %v276, %v287
    %v289 = vtanh.pop %v288
    %291 = vset.pattern.permute.xlu0 46
    %292 = vperm.xlu0 %291, %v289
    %v293 = vpop.permute.xlu0 %292
    %v295 = vlaneseq
    %v296 = vshrl.u32 %v295, 7
    %v297 = vsub.s32 6, %v296
    %v298 = vrot.slane %v120, %v297
    %v299 = vmul.f32 %v293, %v298
    %v300 = vadd.f32 %v288, %v299
    %v301 = vtanh.pop %v300
    %303 = vset.pattern.permute.xlu0 47
    %304 = vperm.xlu0 %303, %v301
    %v305 = vpop.permute.xlu0 %304
    %v307 = vlaneseq
    %v308 = vshrl.u32 %v307, 7
    %v309 = vsub.s32 7, %v308
    %v310 = vrot.slane %v120, %v309
    %v311 = vmul.f32 %v305, %v310
    %v312 = vadd.f32 %v300, %v311
    %vm313 = vcmask 261120
    %314 = vst.msk [vmem:[#allocation5] sm:$0xff] %vm313, %v312
    // Predicated region
    $region22: #{ren_forward.1} parent=1 // pred_check
      _
    $region23: #{ren_forward.1} parent=1 // pred_check_branch
      %316 = sbr.rel (0) target = $region25
    $region24: #{ren_forward.1} parent=1 // pred_region
      %s318 = ssub.s32 128, 128
      %319 = vsyncadd [#allocation4], %s318
      %s321 = sshll.u32 [#allocation5], 4
      %s322 = int_to_ptr.vmem [resolvable:$true] %s321
      %324 = dma.vmem_to_hbm [thread:$0]  %s322, 128, %s4, [#allocation4]
    $region25: #{ren_forward.1} parent=1 // pred_fallthru
      _
    // Predicated region
    $region26: #{ren_forward.1} parent=1 // pred_check
      _
    $region27: #{ren_forward.1} parent=1 // pred_check_branch
      %326 = sbr.rel (0) target = $region29
    $region28: #{ren_forward.1} parent=1 // pred_region
      %327 = dma.done [#allocation4], 128
    $region29: #{ren_forward.1} parent=1 // pred_fallthru
      _
    %328 = vsyncpa [#allocation3], 1
    %329 = vsyncpa [#allocation4], 1

</llo_original>
